<compile_context>
chip_gen: v6e
topology: v6e:2x2x1
jax: 0.10.0
libtpu: 0.0.40
codegen_flags: <defaults>
</compile_context>

<pallas_src>
import functools

import jax
import jax.numpy as jnp
from jax import lax
from jax.experimental import pallas as pl
from jax.experimental.pallas import tpu as pltpu

LANES = 128      # vreg lane width
SUBLANES = 8     # vreg sublane height (f32)

# Lane layout inside the combined 128x128 weight block and the output slab.
H1_LANE = 0      # conv1 / conv2 outputs live in lanes [0, 4)
H3_LANE = 4      # conv3 output (h3) lives in lanes [4, 6)
OUT_LANE = 8     # classifier logits live in lanes [8, 8+C)


def _round_up(v, m):
    return (v + m - 1) // m * m


def gcn_kernel(g_ref, p_ref, out_ref, *, p, r_wb, r_b):
    """Whole GCN forward in one invocation.

    g_ref   : [2P, P]   rows 0:P  = zero-padded normalized adjacency A_hat
                        rows P:2P = zero-padded node features X
    p_ref   : [PR, 128] packed parameter slab:
                        rows 0:P       W1 (real rows 0:F, cols 0:4)
                        rows P:P+128   combined W2/W3/WC block
                        rows r_b:r_b+4 b1, b2, b3, bc
    out_ref : [P, 128]  lanes 4:6 = h3, lanes 8:8+C = logits (rest junk/zero)
    """
    f32 = jnp.float32
    a = g_ref[0:p, :]                       # [P, P]
    x = g_ref[p:2 * p, :]                   # [P, P]

    w1 = p_ref[0:p, :]                      # [P, 128]
    wb = p_ref[r_wb:r_wb + LANES, :]        # [128, 128] combined W2/W3/WC
    b1 = p_ref[r_b + 0:r_b + 1, :]          # [1, 128]
    b2 = p_ref[r_b + 1:r_b + 2, :]
    b3 = p_ref[r_b + 2:r_b + 3, :]
    bc = p_ref[r_b + 3:r_b + 4, :]

    def dot(l, r):
        return jnp.dot(l, r, preferred_element_type=f32)

    # Lane flow (real/garbage lanes of each [P,128] intermediate):
    #   h1: real 0:4, zero elsewhere
    h1 = jnp.tanh(dot(a, dot(x, w1)) + b1)
    #   h2: real 0:4 (h1@W2), garbage 4:6 (h1@W3), zero elsewhere
    h2 = jnp.tanh(dot(a, dot(h1, wb)) + b2)
    #   h3: real 4:6 (h2@W3), garbage 0:4 and 8:8+C, zero elsewhere
    h3 = jnp.tanh(dot(a, dot(h2, wb)) + b3)
    #   out: real 8:8+C (h3[4:6]@WC); garbage lanes of h3 only hit weight rows
    #        whose columns are < 8, so lanes 8:8+C stay exact.
    out = dot(h3, wb) + bc

    # Merge h3 (lanes < 8) and logits (lanes >= 8) into one lane-dense slab:
    # single unmasked full-lane store, single writeback DMA.
    lane = lax.broadcasted_iota(jnp.int32, out.shape, 1)
    out_ref[...] = jnp.where(lane < OUT_LANE, h3, out)


def pack_params(params, num_nodes, num_features):
    """Pack all weights/biases into one (8,128)-aligned f32 slab (built once)."""
    w1, w2, w3, wc = params["w1"], params["w2"], params["w3"], params["wc"]
    h1_dim = w1.shape[1]                 # 4
    h3_dim = w3.shape[1]                 # 2
    num_classes = wc.shape[1]
    # Layout invariants for the combined-block overlay.
    assert h1_dim <= H3_LANE
    assert H3_LANE + h3_dim <= OUT_LANE
    assert OUT_LANE + num_classes <= LANES

    P = _round_up(max(num_nodes, num_features), SUBLANES)
    r_wb = P
    r_b = r_wb + LANES
    total = _round_up(r_b + 4, SUBLANES)

    slab = jnp.zeros((total, LANES), jnp.float32)
    # W1: rows 0:F -> lanes 0:4
    slab = slab.at[0:num_features, H1_LANE:H1_LANE + h1_dim].set(w1)
    # Combined block: W2 rows 0:4 -> lanes 0:4, W3 rows 0:4 -> lanes 4:6,
    #                 WC rows 4:6 -> lanes 8:8+C.  Rows 8:8+C stay zero.
    slab = slab.at[r_wb:r_wb + h1_dim, H1_LANE:H1_LANE + h1_dim].set(w2)
    slab = slab.at[r_wb:r_wb + h1_dim, H3_LANE:H3_LANE + h3_dim].set(w3)
    slab = slab.at[r_wb + H3_LANE:r_wb + H3_LANE + h3_dim,
                   OUT_LANE:OUT_LANE + num_classes].set(wc)
    # Biases (one row each, placed on the matching lane range).
    slab = slab.at[r_b + 0, H1_LANE:H1_LANE + h1_dim].set(params["b1"][0])
    slab = slab.at[r_b + 1, H1_LANE:H1_LANE + h1_dim].set(params["b2"][0])
    slab = slab.at[r_b + 2, H3_LANE:H3_LANE + h3_dim].set(params["b3"][0])
    slab = slab.at[r_b + 3, OUT_LANE:OUT_LANE + num_classes].set(params["bc"][0])

    layout = dict(p=P, r_wb=r_wb, r_b=r_b)
    return slab, layout


def make_gcn_forward(params, num_nodes, num_features):
    """Pack params once, return a jitted forward(a_hat, x) -> (logits, h3)."""
    num_classes = params["wc"].shape[1]
    h3_dim = params["w3"].shape[1]

    slab, layout = pack_params(params, num_nodes, num_features)
    slab = jax.device_put(slab)          # built once, resident on device
    P = layout["p"]

    kernel = functools.partial(gcn_kernel, **layout)
    vmem = pl.BlockSpec(memory_space=pltpu.MemorySpace.VMEM)
    call = pl.pallas_call(
        kernel,
        out_shape=jax.ShapeDtypeStruct((P, LANES), jnp.float32),
        in_specs=[vmem, vmem],
        out_specs=vmem,
    )

    @jax.jit
    def forward(a_hat, x):
        n, f = x.shape
        # Fused padding under jit; padded rows/cols are zero so they never
        # contaminate real node rows.
        a_p = jnp.pad(a_hat.astype(jnp.float32), ((0, P - n), (0, P - n)))
        x_p = jnp.pad(x.astype(jnp.float32), ((0, P - n), (0, P - f)))
        g = jnp.concatenate([a_p, x_p], axis=0)        # [2P, P]
        res = call(g, slab)                            # [P, 128]
        out = res[:n, OUT_LANE:OUT_LANE + num_classes]
        h = res[:n, H3_LANE:H3_LANE + h3_dim]
        return out, h

    return forward


def build_norm_adj(edge_index, num_nodes):
    """Dense D^-1/2 (A + I) D^-1/2 from a [2, E] edge_index (plain-JAX glue)."""
    src, dst = edge_index[0], edge_index[1]
    a = jnp.zeros((num_nodes, num_nodes), jnp.float32)
    a = a.at[src, dst].set(1.0)
    a = a.at[dst, src].set(1.0)                      # symmetrize
    idx = jnp.arange(num_nodes)
    a = a.at[idx, idx].set(1.0)                      # add self-loops
    deg = a.sum(axis=1)
    dinv = jax.lax.rsqrt(deg)                        # deg >= 1 (self-loops)
    return a * dinv[:, None] * dinv[None, :]


def glorot(key, shape):
    fan_in, fan_out = shape
    limit = jnp.sqrt(6.0 / (fan_in + fan_out))
    return jax.random.uniform(key, shape, jnp.float32, -limit, limit)


def init_params(key, num_features, num_classes):
    k1, k2, k3, k4 = jax.random.split(key, 4)
    return {
        "w1": glorot(k1, (num_features, 4)), "b1": jnp.zeros((1, 4), jnp.float32),
        "w2": glorot(k2, (4, 4)),            "b2": jnp.zeros((1, 4), jnp.float32),
        "w3": glorot(k3, (4, 2)),            "b3": jnp.zeros((1, 2), jnp.float32),
        "wc": glorot(k4, (2, num_classes)),  "bc": jnp.zeros((1, num_classes), jnp.float32),
    }


def reference_forward(a_hat, x, p):
    h = jnp.tanh(a_hat @ (x @ p["w1"]) + p["b1"])
    h = jnp.tanh(a_hat @ (h @ p["w2"]) + p["b2"])
    h = jnp.tanh(a_hat @ (h @ p["w3"]) + p["b3"])
    out = h @ p["wc"] + p["bc"]
    return out, h


if __name__ == "__main__":
    # KarateClub-like sizes: 34 nodes, 34 input features, 4 classes.
    N, F, C = 34, 34, 4
    key = jax.random.PRNGKey(0)
    k_x, k_e, k_p = jax.random.split(key, 3)

    # Node features (KarateClub uses one-hot; any deterministic features work).
    x = jax.random.normal(k_x, (N, F), jnp.float32)

    # Deterministic synthetic graph: ring + random chords, shape [2, E].
    ring_src = jnp.arange(N, dtype=jnp.int32)
    ring_dst = (ring_src + 1) % N
    rnd = jax.random.randint(k_e, (2, 32), 0, N, dtype=jnp.int32)
    edge_index = jnp.concatenate(
        [jnp.stack([ring_src, ring_dst]), rnd], axis=1)   # [2, 66]

    a_hat = build_norm_adj(edge_index, N)
    params = init_params(k_p, F, C)

    gcn_forward = make_gcn_forward(params, N, F)

    out, h = gcn_forward(a_hat, x)
    out, h = jax.block_until_ready(out), jax.block_until_ready(h)

    out_ref, h_ref = reference_forward(a_hat, x, params)
    assert out.shape == (N, C) and h.shape == (N, 2)
    assert jnp.allclose(out, out_ref, atol=1e-4, rtol=1e-4)
    assert jnp.allclose(h, h_ref, atol=1e-4, rtol=1e-4)

    print("KERNEL_OK")
</pallas_src>

<mosaic_0001>
module attributes {stable_mosaic.version = 11 : i64} {
  func.func @gcn_kernel(%arg0: memref<80x40xf32, #tpu.memory_space<vmem>>, %arg1: memref<176x128xf32, #tpu.memory_space<vmem>>, %arg2: memref<40x128xf32, #tpu.memory_space<vmem>>) attributes {dimension_semantics = [], scalar_prefetch = 0 : i64, scratch_operands = 0 : i64, tpu.core_type = #tpu.core_type<tc>} {
    %c0 = arith.constant 0 : index
    %c0_0 = arith.constant 0 : index
    %0 = vector.load %arg0[%c0, %c0_0] : memref<80x40xf32, #tpu.memory_space<vmem>>, vector<40x40xf32>
    %c40 = arith.constant 40 : index
    %c0_1 = arith.constant 0 : index
    %1 = vector.load %arg0[%c40, %c0_1] : memref<80x40xf32, #tpu.memory_space<vmem>>, vector<40x40xf32>
    %c0_2 = arith.constant 0 : index
    %c0_3 = arith.constant 0 : index
    %2 = vector.load %arg1[%c0_2, %c0_3] : memref<176x128xf32, #tpu.memory_space<vmem>>, vector<40x128xf32>
    %c40_4 = arith.constant 40 : index
    %c0_5 = arith.constant 0 : index
    %3 = vector.load %arg1[%c40_4, %c0_5] : memref<176x128xf32, #tpu.memory_space<vmem>>, vector<128x128xf32>
    %c168 = arith.constant 168 : index
    %c0_6 = arith.constant 0 : index
    %4 = vector.load %arg1[%c168, %c0_6] : memref<176x128xf32, #tpu.memory_space<vmem>>, vector<1x128xf32>
    %c169 = arith.constant 169 : index
    %c0_7 = arith.constant 0 : index
    %5 = vector.load %arg1[%c169, %c0_7] : memref<176x128xf32, #tpu.memory_space<vmem>>, vector<1x128xf32>
    %c170 = arith.constant 170 : index
    %c0_8 = arith.constant 0 : index
    %6 = vector.load %arg1[%c170, %c0_8] : memref<176x128xf32, #tpu.memory_space<vmem>>, vector<1x128xf32>
    %c171 = arith.constant 171 : index
    %c0_9 = arith.constant 0 : index
    %7 = vector.load %arg1[%c171, %c0_9] : memref<176x128xf32, #tpu.memory_space<vmem>>, vector<1x128xf32>
    %cst = arith.constant dense<0.000000e+00> : vector<40x128xf32>
    %8 = tpu.matmul %1, %2, %cst {dimension_numbers = #tpu.dot_dimension_numbers<[1], [0], [0], [1], [0, 0, 1, 1], [], []>} : vector<40x40xf32>, vector<40x128xf32>, vector<40x128xf32> -> vector<40x128xf32>
    %cst_10 = arith.constant dense<0.000000e+00> : vector<40x128xf32>
    %9 = tpu.matmul %0, %8, %cst_10 {dimension_numbers = #tpu.dot_dimension_numbers<[1], [0], [0], [1], [0, 0, 1, 1], [], []>} : vector<40x40xf32>, vector<40x128xf32>, vector<40x128xf32> -> vector<40x128xf32>
    %10 = vector.broadcast %4 : vector<1x128xf32> to vector<40x128xf32>
    %11 = arith.addf %9, %10 : vector<40x128xf32>
    %12 = math.tanh %11 : vector<40x128xf32>
    %cst_11 = arith.constant dense<0.000000e+00> : vector<40x128xf32>
    %13 = tpu.matmul %12, %3, %cst_11 {dimension_numbers = #tpu.dot_dimension_numbers<[1], [0], [0], [1], [0, 0, 1, 1], [], []>} : vector<40x128xf32>, vector<128x128xf32>, vector<40x128xf32> -> vector<40x128xf32>
    %cst_12 = arith.constant dense<0.000000e+00> : vector<40x128xf32>
    %14 = tpu.matmul %0, %13, %cst_12 {dimension_numbers = #tpu.dot_dimension_numbers<[1], [0], [0], [1], [0, 0, 1, 1], [], []>} : vector<40x40xf32>, vector<40x128xf32>, vector<40x128xf32> -> vector<40x128xf32>
    %15 = vector.broadcast %5 : vector<1x128xf32> to vector<40x128xf32>
    %16 = arith.addf %14, %15 : vector<40x128xf32>
    %17 = math.tanh %16 : vector<40x128xf32>
    %cst_13 = arith.constant dense<0.000000e+00> : vector<40x128xf32>
    %18 = tpu.matmul %17, %3, %cst_13 {dimension_numbers = #tpu.dot_dimension_numbers<[1], [0], [0], [1], [0, 0, 1, 1], [], []>} : vector<40x128xf32>, vector<128x128xf32>, vector<40x128xf32> -> vector<40x128xf32>
    %cst_14 = arith.constant dense<0.000000e+00> : vector<40x128xf32>
    %19 = tpu.matmul %0, %18, %cst_14 {dimension_numbers = #tpu.dot_dimension_numbers<[1], [0], [0], [1], [0, 0, 1, 1], [], []>} : vector<40x40xf32>, vector<40x128xf32>, vector<40x128xf32> -> vector<40x128xf32>
    %20 = vector.broadcast %6 : vector<1x128xf32> to vector<40x128xf32>
    %21 = arith.addf %19, %20 : vector<40x128xf32>
    %22 = math.tanh %21 : vector<40x128xf32>
    %cst_15 = arith.constant dense<0.000000e+00> : vector<40x128xf32>
    %23 = tpu.matmul %22, %3, %cst_15 {dimension_numbers = #tpu.dot_dimension_numbers<[1], [0], [0], [1], [0, 0, 1, 1], [], []>} : vector<40x128xf32>, vector<128x128xf32>, vector<40x128xf32> -> vector<40x128xf32>
    %24 = vector.broadcast %7 : vector<1x128xf32> to vector<40x128xf32>
    %25 = arith.addf %23, %24 : vector<40x128xf32>
    %26 = tpu.iota {dimensions = array<i32: 1>} : vector<40x128xi32>
    %c8_i32 = arith.constant 8 : i32
    %27 = vector.broadcast %c8_i32 : i32 to vector<40x128xi32>
    %28 = arith.cmpi slt, %26, %27 : vector<40x128xi32>
    %29 = arith.select %28, %22, %25 : vector<40x128xi1>, vector<40x128xf32>
    %c0_16 = arith.constant 0 : index
    %c0_17 = arith.constant 0 : index
    %30 = vector.load %arg2[%c0_16, %c0_17] : memref<40x128xf32, #tpu.memory_space<vmem>>, vector<40x128xf32>
    tpu.vector_store %arg2[%c0_16, %c0_17], %29 {strides = array<i32>} : memref<40x128xf32, #tpu.memory_space<vmem>>, vector<40x128xf32>,
    return
  }
}

</mosaic_0001>

<llo_original>
// kernel: forward.1
$region0: #{forward.1}
  #allocation0 [shape = 'u32[]', space=smem, size = 0x4, offset = 0x4, fixed_abs, tag = 'smem constant byte address 0x4 - core index']
  #allocation1 [shape = 'u32[144,128]{1,0:T(1,128)}', space=vmem, size = 0x12000, scoped, tag = 'internal scratch']
  %s0 = inlined_call_operand.vmem [shape: f32[80,40], index: 0, kind: input, shape index: {}]
  %s1 = inlined_call_operand.hbm [shape: f32[176,128], index: 1, kind: input, shape index: {}]
  %s2 = inlined_call_operand.vmem [shape: f32[40,128], index: 2, kind: output, shape index: {}]
  %s3 = sld [smem:[#allocation0]]
  $region22: #{forward.1} parent=0
    _
  %s5 = ssub.s32 1, %s3
  %s6 = scalar_select 0, %s5, %s3
  $region1: #{forward.1} parent=0
    #allocation2 [shape = 'u8[90112]{0}', space=vmem, size = 0x16000, scoped, tag = 'input window, operand 1, single buffered']
    #allocation3 [shape = 's32[1]{0}', space=sflag, size = 0x4, scoped, tag = 'scoped memory for forward.1']
    %7 = vsyncpa [#allocation3], 0
    // Predicated region
    $region2: #{forward.1} parent=1 // pred_check
      _
    $region3: #{forward.1} parent=1 // pred_check_branch
      %9 = sbr.rel (0) target = $region5
    $region4: #{forward.1} parent=1 // pred_region
      _
    $region5: #{forward.1} parent=1 // pred_fallthru
      _
    // Predicated region
    $region6: #{forward.1} parent=1 // pred_check
      _
    $region7: #{forward.1} parent=1 // pred_check_branch
      %11 = sbr.rel (0) target = $region9
    $region8: #{forward.1} parent=1 // pred_region
      %s13 = ssub.s32 2816, 2816
      %14 = vsyncadd [#allocation3], %s13
      %s15 = sshll.u32 [#allocation2], 4
      %s16 = int_to_ptr.vmem [resolvable:$true] %s15
      %21 = dma.hbm_to_vmem [thread:$0]  %s1, 2816, %s16, [#allocation3], 128, 128, 8
    $region9: #{forward.1} parent=1 // pred_fallthru
      _
    // Predicated region
    $region10: #{forward.1} parent=1 // pred_check
      _
    $region11: #{forward.1} parent=1 // pred_check_branch
      %23 = sbr.rel (0) target = $region13
    $region12: #{forward.1} parent=1 // pred_region
      %24 = dma.done [#allocation3], 2816
    $region13: #{forward.1} parent=1 // pred_fallthru
      _
    %v25 = vld [vmem:[%s0] sm:$0xff]
    %v26 = vld [vmem:[%s0 + $0x8] sm:$0xff]
    %v27 = vld [vmem:[%s0 + $0x10] sm:$0xff]
    %v28 = vld [vmem:[%s0 + $0x18] sm:$0xff]
    %v29 = vld [vmem:[%s0 + $0x20] sm:$0xff]
    %v30 = vld [vmem:[%s0 + $0x28] sm:$0xff]
    %v31 = vld [vmem:[%s0 + $0x30] sm:$0xff]
    %v32 = vld [vmem:[%s0 + $0x38] sm:$0xff]
    %v33 = vld [vmem:[%s0 + $0x40] sm:$0xff]
    %v34 = vld [vmem:[%s0 + $0x48] sm:$0xff]
    %v35 = vld [vmem:[#allocation2] sm:$0xff]
    %v36 = vld [vmem:[#allocation2 + $0x8] sm:$0xff]
    %v37 = vld [vmem:[#allocation2 + $0x10] sm:$0xff]
    %v38 = vld [vmem:[#allocation2 + $0x18] sm:$0xff]
    %v39 = vld [vmem:[#allocation2 + $0x20] sm:$0xff]
    %v40 = vld [vmem:[#allocation2 + $0x28] sm:$0xff]
    %v41 = vld [vmem:[#allocation2 + $0x30] sm:$0xff]
    %v42 = vld [vmem:[#allocation2 + $0x38] sm:$0xff]
    %v43 = vld [vmem:[#allocation2 + $0x40] sm:$0xff]
    %v44 = vld [vmem:[#allocation2 + $0x48] sm:$0xff]
    %v45 = vld [vmem:[#allocation2 + $0x50] sm:$0xff]
    %v46 = vld [vmem:[#allocation2 + $0x58] sm:$0xff]
    %v47 = vld [vmem:[#allocation2 + $0x60] sm:$0xff]
    %v48 = vld [vmem:[#allocation2 + $0x68] sm:$0xff]
    %v49 = vld [vmem:[#allocation2 + $0x70] sm:$0xff]
    %v50 = vld [vmem:[#allocation2 + $0x78] sm:$0xff]
    %v51 = vld [vmem:[#allocation2 + $0x80] sm:$0xff]
    %v52 = vld [vmem:[#allocation2 + $0x88] sm:$0xff]
    %v53 = vld [vmem:[#allocation2 + $0x90] sm:$0xff]
    %v54 = vld [vmem:[#allocation2 + $0x98] sm:$0xff]
    %v55 = vld [vmem:[#allocation2 + $0xa0] sm:$0xff]
    %v56 = vld [vmem:[#allocation2 + $0xa8] sm:$0x1]
    %v57 = vld [vmem:[#allocation2 + $0xa9] sm:$0x1]
    %v58 = vld [vmem:[#allocation2 + $0xaa] sm:$0x1]
    %v59 = vld [vmem:[#allocation2 + $0xab] sm:$0x1]
    %vm60 = vcmask 326656
    %v62 = vsel %vm60, %v30, 0
    %v65 = vsel %vm60, %v31, 0
    %v68 = vsel %vm60, %v32, 0
    %v71 = vsel %vm60, %v33, 0
    %v74 = vsel %vm60, %v34, 0
    %76 = vmatprep.subr.mxu0 0.0
    %77 = vmatpush1.msra.mxu0 0.0
    %78 = vmatprep.subr.mxu0 0.0
    %79 = vmatpush1.msra.mxu0 0.0
    %80 = vmatprep.subr.mxu0 0.0
    %81 = vmatpush1.msra.mxu0 0.0
    %82 = vmatprep.subr.mxu0 0.0
    %83 = vmatpush1.msra.mxu0 0.0
    %84 = vmatprep.subr.mxu0 0.0
    %85 = vmatpush1.msra.mxu0 0.0
    %86 = vmatprep.subr.mxu0 0.0
    %87 = vmatpush1.msra.mxu0 0.0
    %88 = vmatprep.subr.mxu0 0.0
    %89 = vmatpush1.msra.mxu0 0.0
    %90 = vmatprep.subr.mxu0 0.0
    %91 = vmatpush1.msra.mxu0 0.0
    %92 = vmatprep.subr.mxu0 0.0
    %93 = vmatpush1.msra.mxu0 0.0
    %94 = vmatprep.subr.mxu0 0.0
    %95 = vmatpush1.msra.mxu0 0.0
    %96 = vmatprep.subr.mxu0 0.0
    %97 = vmatpush1.msra.mxu0 0.0
    %98 = vmatprep.subr.mxu0 0.0
    %99 = vmatpush1.msra.mxu0 %v39
    %100 = vmatprep.subr.mxu0 0.0
    %101 = vmatpush1.msra.mxu0 %v38
    %102 = vmatprep.subr.mxu0 0.0
    %103 = vmatpush1.msra.mxu0 %v37
    %104 = vmatprep.subr.mxu0 0.0
    %105 = vmatpush1.msra.mxu0 %v36
    %106 = vmatprep.subr.mxu0 0.0
    %107 = vmatpush1.msra.mxu0 %v35
    %108 = vmatprep.subr.mxu0 0.0
    %109 = vmatpush2.msra.mxu0 0.0
    %110 = vmatprep.subr.mxu0 0.0
    %111 = vmatpush2.msra.mxu0 0.0
    %112 = vmatprep.subr.mxu0 0.0
    %113 = vmatpush2.msra.mxu0 0.0
    %114 = vmatprep.subr.mxu0 0.0
    %115 = vmatpush2.msra.mxu0 0.0
    %116 = vmatprep.subr.mxu0 0.0
    %117 = vmatpush2.msra.mxu0 0.0
    %118 = vmatprep.subr.mxu0 0.0
    %119 = vmatpush2.msra.mxu0 0.0
    %120 = vmatprep.subr.mxu0 0.0
    %121 = vmatpush2.msra.mxu0 0.0
    %122 = vmatprep.subr.mxu0 0.0
    %123 = vmatpush2.msra.mxu0 0.0
    %124 = vmatprep.subr.mxu0 0.0
    %125 = vmatpush2.msra.mxu0 0.0
    %126 = vmatprep.subr.mxu0 0.0
    %127 = vmatpush2.msra.mxu0 0.0
    %128 = vmatprep.subr.mxu0 0.0
    %129 = vmatpush2.msra.mxu0 0.0
    %130 = vmatprep.subr.mxu0 0.0
    %131 = vmatpush2.msra.mxu0 0.0
    %132 = vmatprep.subr.mxu0 0.0
    %133 = vmatpush2.msra.mxu0 0.0
    %134 = vmatprep.subr.mxu0 0.0
    %135 = vmatpush2.msra.mxu0 0.0
    %136 = vmatprep.subr.mxu0 0.0
    %137 = vmatpush2.msra.mxu0 0.0
    %138 = vmatprep.subr.mxu0 0.0
    %139 = vmatpush2.msra.mxu0 0.0
    %140 = vmatprep.mubr.f32.mxu0 0.0
    %141 = vmatmul.mubr.f32.gmra.mxu0 %v62
    %v142 = vpop.f32.mrf.mxu0
    %v143 = vadd.f32 0.0, %v142
    %v144 = vpop.f32.mrf.mxu0
    %145 = vmatprep.mubr.f32.mxu0 0.0
    %146 = vmatmul.mubr.f32.gmra.mxu0 %v65
    %v147 = vpop.f32.mrf.mxu0
    %v148 = vadd.f32 0.0, %v147
    %v149 = vpop.f32.mrf.mxu0
    %150 = vmatprep.mubr.f32.mxu0 0.0
    %151 = vmatmul.mubr.f32.gmra.mxu0 %v68
    %v152 = vpop.f32.mrf.mxu0
    %v153 = vadd.f32 0.0, %v152
    %v154 = vpop.f32.mrf.mxu0
    %155 = vmatprep.mubr.f32.mxu0 0.0
    %156 = vmatmul.mubr.f32.gmra.mxu0 %v71
    %v157 = vpop.f32.mrf.mxu0
    %v158 = vadd.f32 0.0, %v157
    %v159 = vpop.f32.mrf.mxu0
    %160 = vmatprep.mubr.f32.mxu0 0.0
    %161 = vmatmul.mubr.f32.gmra.mxu0 %v74
    %v162 = vpop.f32.mrf.mxu0
    %v163 = vadd.f32 0.0, %v162
    %v164 = vpop.f32.mrf.mxu0
    %165 = vdwg.mxu0
    %v166 = vlaneseq
    %v167 = vshrl.u32 %v166, 7
    %v168 = vsub.s32 0, %v167
    %v169 = vrot.slane %v56, %v168
    %v171 = vsel %vm60, %v25, 0
    %v174 = vsel %vm60, %v26, 0
    %v177 = vsel %vm60, %v27, 0
    %v180 = vsel %vm60, %v28, 0
    %v183 = vsel %vm60, %v29, 0
    %185 = vmatprep.subr.mxu0 0.0
    %186 = vmatpush1.msra.mxu0 0.0
    %187 = vmatprep.subr.mxu0 0.0
    %188 = vmatpush1.msra.mxu0 0.0
    %189 = vmatprep.subr.mxu0 0.0
    %190 = vmatpush1.msra.mxu0 0.0
    %191 = vmatprep.subr.mxu0 0.0
    %192 = vmatpush1.msra.mxu0 0.0
    %193 = vmatprep.subr.mxu0 0.0
    %194 = vmatpush1.msra.mxu0 0.0
    %195 = vmatprep.subr.mxu0 0.0
    %196 = vmatpush1.msra.mxu0 0.0
    %197 = vmatprep.subr.mxu0 0.0
    %198 = vmatpush1.msra.mxu0 0.0
    %199 = vmatprep.subr.mxu0 0.0
    %200 = vmatpush1.msra.mxu0 0.0
    %201 = vmatprep.subr.mxu0 0.0
    %202 = vmatpush1.msra.mxu0 0.0
    %203 = vmatprep.subr.mxu0 0.0
    %204 = vmatpush1.msra.mxu0 0.0
    %205 = vmatprep.subr.mxu0 0.0
    %206 = vmatpush1.msra.mxu0 0.0
    %207 = vmatprep.subr.mxu0 0.0
    %208 = vmatpush1.msra.mxu0 %v163
    %209 = vmatprep.subr.mxu0 0.0
    %210 = vmatpush1.msra.mxu0 %v158
    %211 = vmatprep.subr.mxu0 0.0
    %212 = vmatpush1.msra.mxu0 %v153
    %213 = vmatprep.subr.mxu0 0.0
    %214 = vmatpush1.msra.mxu0 %v148
    %215 = vmatprep.subr.mxu0 0.0
    %216 = vmatpush1.msra.mxu0 %v143
    %217 = vmatprep.subr.mxu0 0.0
    %218 = vmatpush2.msra.mxu0 0.0
    %219 = vmatprep.subr.mxu0 0.0
    %220 = vmatpush2.msra.mxu0 0.0
    %221 = vmatprep.subr.mxu0 0.0
    %222 = vmatpush2.msra.mxu0 0.0
    %223 = vmatprep.subr.mxu0 0.0
    %224 = vmatpush2.msra.mxu0 0.0
    %225 = vmatprep.subr.mxu0 0.0
    %226 = vmatpush2.msra.mxu0 0.0
    %227 = vmatprep.subr.mxu0 0.0
    %228 = vmatpush2.msra.mxu0 0.0
    %229 = vmatprep.subr.mxu0 0.0
    %230 = vmatpush2.msra.mxu0 0.0
    %231 = vmatprep.subr.mxu0 0.0
    %232 = vmatpush2.msra.mxu0 0.0
    %233 = vmatprep.subr.mxu0 0.0
    %234 = vmatpush2.msra.mxu0 0.0
    %235 = vmatprep.subr.mxu0 0.0
    %236 = vmatpush2.msra.mxu0 0.0
    %237 = vmatprep.subr.mxu0 0.0
    %238 = vmatpush2.msra.mxu0 0.0
    %239 = vmatprep.subr.mxu0 0.0
    %240 = vmatpush2.msra.mxu0 0.0
    %241 = vmatprep.subr.mxu0 0.0
    %242 = vmatpush2.msra.mxu0 0.0
    %243 = vmatprep.subr.mxu0 0.0
    %244 = vmatpush2.msra.mxu0 0.0
    %245 = vmatprep.subr.mxu0 0.0
    %246 = vmatpush2.msra.mxu0 0.0
    %247 = vmatprep.subr.mxu0 0.0
    %248 = vmatpush2.msra.mxu0 0.0
    %249 = vmatprep.mubr.f32.mxu0 0.0
    %250 = vmatmul.mubr.f32.gmra.mxu0 %v171
    %v251 = vpop.f32.mrf.mxu0
    %v252 = vadd.f32 %v169, %v251
    %v253 = vpop.f32.mrf.mxu0
    %254 = vmatprep.mubr.f32.mxu0 0.0
    %255 = vmatmul.mubr.f32.gmra.mxu0 %v174
    %v256 = vpop.f32.mrf.mxu0
    %v257 = vadd.f32 %v169, %v256
    %v258 = vpop.f32.mrf.mxu0
    %259 = vmatprep.mubr.f32.mxu0 0.0
    %260 = vmatmul.mubr.f32.gmra.mxu0 %v177
    %v261 = vpop.f32.mrf.mxu0
    %v262 = vadd.f32 %v169, %v261
    %v263 = vpop.f32.mrf.mxu0
    %264 = vmatprep.mubr.f32.mxu0 0.0
    %265 = vmatmul.mubr.f32.gmra.mxu0 %v180
    %v266 = vpop.f32.mrf.mxu0
    %v267 = vadd.f32 %v169, %v266
    %v268 = vpop.f32.mrf.mxu0
    %269 = vmatprep.mubr.f32.mxu0 0.0
    %270 = vmatmul.mubr.f32.gmra.mxu0 %v183
    %v271 = vpop.f32.mrf.mxu0
    %v272 = vadd.f32 %v169, %v271
    %v273 = vpop.f32.mrf.mxu0
    %274 = vdwg.mxu0
    %v275 = vtanh.pop %v252
    %v276 = vtanh.pop %v257
    %v277 = vtanh.pop %v262
    %v278 = vtanh.pop %v267
    %v279 = vtanh.pop %v272
    %280 = vmatprep.subr.mxu0 0.0
    %281 = vmatpush1.msra.mxu0 %v55
    %282 = vmatprep.subr.mxu0 0.0
    %283 = vmatpush1.msra.mxu0 %v54
    %284 = vmatprep.subr.mxu0 0.0
    %285 = vmatpush1.msra.mxu0 %v53
    %286 = vmatprep.subr.mxu0 0.0
    %287 = vmatpush1.msra.mxu0 %v52
    %288 = vmatprep.subr.mxu0 0.0
    %289 = vmatpush1.msra.mxu0 %v51
    %290 = vmatprep.subr.mxu0 0.0
    %291 = vmatpush1.msra.mxu0 %v50
    %292 = vmatprep.subr.mxu0 0.0
    %293 = vmatpush1.msra.mxu0 %v49
    %294 = vmatprep.subr.mxu0 0.0
    %295 = vmatpush1.msra.mxu0 %v48
    %296 = vmatprep.subr.mxu0 0.0
    %297 = vmatpush1.msra.mxu0 %v47
    %298 = vmatprep.subr.mxu0 0.0
    %299 = vmatpush1.msra.mxu0 %v46
    %300 = vmatprep.subr.mxu0 0.0
    %301 = vmatpush1.msra.mxu0 %v45
    %302 = vmatprep.subr.mxu0 0.0
    %303 = vmatpush1.msra.mxu0 %v44
    %304 = vmatprep.subr.mxu0 0.0
    %305 = vmatpush1.msra.mxu0 %v43
    %306 = vmatprep.subr.mxu0 0.0
    %307 = vmatpush1.msra.mxu0 %v42
    %308 = vmatprep.subr.mxu0 0.0
    %309 = vmatpush1.msra.mxu0 %v41
    %310 = vmatprep.subr.mxu0 0.0
    %311 = vmatpush1.msra.mxu0 %v40
    %312 = vmatprep.subr.mxu0 0.0
    %313 = vmatpush2.msra.mxu0 0.0
    %314 = vmatprep.subr.mxu0 0.0
    %315 = vmatpush2.msra.mxu0 0.0
    %316 = vmatprep.subr.mxu0 0.0
    %317 = vmatpush2.msra.mxu0 0.0
    %318 = vmatprep.subr.mxu0 0.0
    %319 = vmatpush2.msra.mxu0 0.0
    %320 = vmatprep.subr.mxu0 0.0
    %321 = vmatpush2.msra.mxu0 0.0
    %322 = vmatprep.subr.mxu0 0.0
    %323 = vmatpush2.msra.mxu0 0.0
    %324 = vmatprep.subr.mxu0 0.0
    %325 = vmatpush2.msra.mxu0 0.0
    %326 = vmatprep.subr.mxu0 0.0
    %327 = vmatpush2.msra.mxu0 0.0
    %328 = vmatprep.subr.mxu0 0.0
    %329 = vmatpush2.msra.mxu0 0.0
    %330 = vmatprep.subr.mxu0 0.0
    %331 = vmatpush2.msra.mxu0 0.0
    %332 = vmatprep.subr.mxu0 0.0
    %333 = vmatpush2.msra.mxu0 0.0
    %334 = vmatprep.subr.mxu0 0.0
    %335 = vmatpush2.msra.mxu0 0.0
    %336 = vmatprep.subr.mxu0 0.0
    %337 = vmatpush2.msra.mxu0 0.0
    %338 = vmatprep.subr.mxu0 0.0
    %339 = vmatpush2.msra.mxu0 0.0
    %340 = vmatprep.subr.mxu0 0.0
    %341 = vmatpush2.msra.mxu0 0.0
    %342 = vmatprep.subr.mxu0 0.0
    %343 = vmatpush2.msra.mxu0 0.0
    %344 = vmatprep.mubr.f32.mxu0 0.0
    %345 = vmatmul.mubr.f32.gmra.mxu0 %v275
    %v346 = vpop.f32.mrf.mxu0
    %v347 = vadd.f32 0.0, %v346
    %v348 = vpop.f32.mrf.mxu0
    %349 = vmatprep.mubr.f32.mxu0 0.0
    %350 = vmatmul.mubr.f32.gmra.mxu0 %v276
    %v351 = vpop.f32.mrf.mxu0
    %v352 = vadd.f32 0.0, %v351
    %v353 = vpop.f32.mrf.mxu0
    %354 = vmatprep.mubr.f32.mxu0 0.0
    %355 = vmatmul.mubr.f32.gmra.mxu0 %v277
    %v356 = vpop.f32.mrf.mxu0
    %v357 = vadd.f32 0.0, %v356
    %v358 = vpop.f32.mrf.mxu0
    %359 = vmatprep.mubr.f32.mxu0 0.0
    %360 = vmatmul.mubr.f32.gmra.mxu0 %v278
    %v361 = vpop.f32.mrf.mxu0
    %v362 = vadd.f32 0.0, %v361
    %v363 = vpop.f32.mrf.mxu0
    %364 = vmatprep.mubr.f32.mxu0 0.0
    %365 = vmatmul.mubr.f32.gmra.mxu0 %v279
    %v366 = vpop.f32.mrf.mxu0
    %v367 = vadd.f32 0.0, %v366
    %v368 = vpop.f32.mrf.mxu0
    %369 = vdwg.mxu0
    %v370 = vlaneseq
    %v371 = vshrl.u32 %v370, 7
    %v372 = vsub.s32 0, %v371
    %v373 = vrot.slane %v57, %v372
    %374 = vmatprep.subr.mxu0 0.0
    %375 = vmatpush1.msra.mxu0 0.0
    %376 = vmatprep.subr.mxu0 0.0
    %377 = vmatpush1.msra.mxu0 0.0
    %378 = vmatprep.subr.mxu0 0.0
    %379 = vmatpush1.msra.mxu0 0.0
    %380 = vmatprep.subr.mxu0 0.0
    %381 = vmatpush1.msra.mxu0 0.0
    %382 = vmatprep.subr.mxu0 0.0
    %383 = vmatpush1.msra.mxu0 0.0
    %384 = vmatprep.subr.mxu0 0.0
    %385 = vmatpush1.msra.mxu0 0.0
    %386 = vmatprep.subr.mxu0 0.0
    %387 = vmatpush1.msra.mxu0 0.0
    %388 = vmatprep.subr.mxu0 0.0
    %389 = vmatpush1.msra.mxu0 0.0
    %390 = vmatprep.subr.mxu0 0.0
    %391 = vmatpush1.msra.mxu0 0.0
    %392 = vmatprep.subr.mxu0 0.0
    %393 = vmatpush1.msra.mxu0 0.0
    %394 = vmatprep.subr.mxu0 0.0
    %395 = vmatpush1.msra.mxu0 0.0
    %396 = vmatprep.subr.mxu0 0.0
    %397 = vmatpush1.msra.mxu0 %v367
    %398 = vmatprep.subr.mxu0 0.0
    %399 = vmatpush1.msra.mxu0 %v362
    %400 = vmatprep.subr.mxu0 0.0
    %401 = vmatpush1.msra.mxu0 %v357
    %402 = vmatprep.subr.mxu0 0.0
    %403 = vmatpush1.msra.mxu0 %v352
    %404 = vmatprep.subr.mxu0 0.0
    %405 = vmatpush1.msra.mxu0 %v347
    %406 = vmatprep.subr.mxu0 0.0
    %407 = vmatpush2.msra.mxu0 0.0
    %408 = vmatprep.subr.mxu0 0.0
    %409 = vmatpush2.msra.mxu0 0.0
    %410 = vmatprep.subr.mxu0 0.0
    %411 = vmatpush2.msra.mxu0 0.0
    %412 = vmatprep.subr.mxu0 0.0
    %413 = vmatpush2.msra.mxu0 0.0
    %414 = vmatprep.subr.mxu0 0.0
    %415 = vmatpush2.msra.mxu0 0.0
    %416 = vmatprep.subr.mxu0 0.0
    %417 = vmatpush2.msra.mxu0 0.0
    %418 = vmatprep.subr.mxu0 0.0
    %419 = vmatpush2.msra.mxu0 0.0
    %420 = vmatprep.subr.mxu0 0.0
    %421 = vmatpush2.msra.mxu0 0.0
    %422 = vmatprep.subr.mxu0 0.0
    %423 = vmatpush2.msra.mxu0 0.0
    %424 = vmatprep.subr.mxu0 0.0
    %425 = vmatpush2.msra.mxu0 0.0
    %426 = vmatprep.subr.mxu0 0.0
    %427 = vmatpush2.msra.mxu0 0.0
    %428 = vmatprep.subr.mxu0 0.0
    %429 = vmatpush2.msra.mxu0 0.0
    %430 = vmatprep.subr.mxu0 0.0
    %431 = vmatpush2.msra.mxu0 0.0
    %432 = vmatprep.subr.mxu0 0.0
    %433 = vmatpush2.msra.mxu0 0.0
    %434 = vmatprep.subr.mxu0 0.0
    %435 = vmatpush2.msra.mxu0 0.0
    %436 = vmatprep.subr.mxu0 0.0
    %437 = vmatpush2.msra.mxu0 0.0
    %438 = vmatprep.mubr.f32.mxu0 0.0
    %439 = vmatmul.mubr.f32.gmra.mxu0 %v171
    %v440 = vpop.f32.mrf.mxu0
    %v441 = vadd.f32 %v373, %v440
    %v442 = vpop.f32.mrf.mxu0
    %443 = vmatprep.mubr.f32.mxu0 0.0
    %444 = vmatmul.mubr.f32.gmra.mxu0 %v174
    %v445 = vpop.f32.mrf.mxu0
    %v446 = vadd.f32 %v373, %v445
    %v447 = vpop.f32.mrf.mxu0
    %448 = vmatprep.mubr.f32.mxu0 0.0
    %449 = vmatmul.mubr.f32.gmra.mxu0 %v177
    %v450 = vpop.f32.mrf.mxu0
    %v451 = vadd.f32 %v373, %v450
    %v452 = vpop.f32.mrf.mxu0
    %453 = vmatprep.mubr.f32.mxu0 0.0
    %454 = vmatmul.mubr.f32.gmra.mxu0 %v180
    %v455 = vpop.f32.mrf.mxu0
    %v456 = vadd.f32 %v373, %v455
    %v457 = vpop.f32.mrf.mxu0
    %458 = vmatprep.mubr.f32.mxu0 0.0
    %459 = vmatmul.mubr.f32.gmra.mxu0 %v183
    %v460 = vpop.f32.mrf.mxu0
    %v461 = vadd.f32 %v373, %v460
    %v462 = vpop.f32.mrf.mxu0
    %463 = vdwg.mxu0
    %v464 = vtanh.pop %v441
    %v465 = vtanh.pop %v446
    %v466 = vtanh.pop %v451
    %v467 = vtanh.pop %v456
    %v468 = vtanh.pop %v461
    %469 = vmatprep.subr.mxu0 0.0
    %470 = vmatpush1.msra.mxu0 %v55
    %471 = vmatprep.subr.mxu0 0.0
    %472 = vmatpush1.msra.mxu0 %v54
    %473 = vmatprep.subr.mxu0 0.0
    %474 = vmatpush1.msra.mxu0 %v53
    %475 = vmatprep.subr.mxu0 0.0
    %476 = vmatpush1.msra.mxu0 %v52
    %477 = vmatprep.subr.mxu0 0.0
    %478 = vmatpush1.msra.mxu0 %v51
    %479 = vmatprep.subr.mxu0 0.0
    %480 = vmatpush1.msra.mxu0 %v50
    %481 = vmatprep.subr.mxu0 0.0
    %482 = vmatpush1.msra.mxu0 %v49
    %483 = vmatprep.subr.mxu0 0.0
    %484 = vmatpush1.msra.mxu0 %v48
    %485 = vmatprep.subr.mxu0 0.0
    %486 = vmatpush1.msra.mxu0 %v47
    %487 = vmatprep.subr.mxu0 0.0
    %488 = vmatpush1.msra.mxu0 %v46
    %489 = vmatprep.subr.mxu0 0.0
    %490 = vmatpush1.msra.mxu0 %v45
    %491 = vmatprep.subr.mxu0 0.0
    %492 = vmatpush1.msra.mxu0 %v44
    %493 = vmatprep.subr.mxu0 0.0
    %494 = vmatpush1.msra.mxu0 %v43
    %495 = vmatprep.subr.mxu0 0.0
    %496 = vmatpush1.msra.mxu0 %v42
    %497 = vmatprep.subr.mxu0 0.0
    %498 = vmatpush1.msra.mxu0 %v41
    %499 = vmatprep.subr.mxu0 0.0
    %500 = vmatpush1.msra.mxu0 %v40
    %501 = vmatprep.subr.mxu0 0.0
    %502 = vmatpush2.msra.mxu0 0.0
    %503 = vmatprep.subr.mxu0 0.0
    %504 = vmatpush2.msra.mxu0 0.0
    %505 = vmatprep.subr.mxu0 0.0
    %506 = vmatpush2.msra.mxu0 0.0
    %507 = vmatprep.subr.mxu0 0.0
    %508 = vmatpush2.msra.mxu0 0.0
    %509 = vmatprep.subr.mxu0 0.0
    %510 = vmatpush2.msra.mxu0 0.0
    %511 = vmatprep.subr.mxu0 0.0
    %512 = vmatpush2.msra.mxu0 0.0
    %513 = vmatprep.subr.mxu0 0.0
    %514 = vmatpush2.msra.mxu0 0.0
    %515 = vmatprep.subr.mxu0 0.0
    %516 = vmatpush2.msra.mxu0 0.0
    %517 = vmatprep.subr.mxu0 0.0
    %518 = vmatpush2.msra.mxu0 0.0
    %519 = vmatprep.subr.mxu0 0.0
    %520 = vmatpush2.msra.mxu0 0.0
    %521 = vmatprep.subr.mxu0 0.0
    %522 = vmatpush2.msra.mxu0 0.0
    %523 = vmatprep.subr.mxu0 0.0
    %524 = vmatpush2.msra.mxu0 0.0
    %525 = vmatprep.subr.mxu0 0.0
    %526 = vmatpush2.msra.mxu0 0.0
    %527 = vmatprep.subr.mxu0 0.0
    %528 = vmatpush2.msra.mxu0 0.0
    %529 = vmatprep.subr.mxu0 0.0
    %530 = vmatpush2.msra.mxu0 0.0
    %531 = vmatprep.subr.mxu0 0.0
    %532 = vmatpush2.msra.mxu0 0.0
    %533 = vmatprep.mubr.f32.mxu0 0.0
    %534 = vmatmul.mubr.f32.gmra.mxu0 %v464
    %v535 = vpop.f32.mrf.mxu0
    %v536 = vadd.f32 0.0, %v535
    %v537 = vpop.f32.mrf.mxu0
    %538 = vmatprep.mubr.f32.mxu0 0.0
    %539 = vmatmul.mubr.f32.gmra.mxu0 %v465
    %v540 = vpop.f32.mrf.mxu0
    %v541 = vadd.f32 0.0, %v540
    %v542 = vpop.f32.mrf.mxu0
    %543 = vmatprep.mubr.f32.mxu0 0.0
    %544 = vmatmul.mubr.f32.gmra.mxu0 %v466
    %v545 = vpop.f32.mrf.mxu0
    %v546 = vadd.f32 0.0, %v545
    %v547 = vpop.f32.mrf.mxu0
    %548 = vmatprep.mubr.f32.mxu0 0.0
    %549 = vmatmul.mubr.f32.gmra.mxu0 %v467
    %v550 = vpop.f32.mrf.mxu0
    %v551 = vadd.f32 0.0, %v550
    %v552 = vpop.f32.mrf.mxu0
    %553 = vmatprep.mubr.f32.mxu0 0.0
    %554 = vmatmul.mubr.f32.gmra.mxu0 %v468
    %v555 = vpop.f32.mrf.mxu0
    %v556 = vadd.f32 0.0, %v555
    %v557 = vpop.f32.mrf.mxu0
    %558 = vdwg.mxu0
    %v559 = vlaneseq
    %v560 = vshrl.u32 %v559, 7
    %v561 = vsub.s32 0, %v560
    %v562 = vrot.slane %v58, %v561
    %563 = vmatprep.subr.mxu0 0.0
    %564 = vmatpush1.msra.mxu0 0.0
    %565 = vmatprep.subr.mxu0 0.0
    %566 = vmatpush1.msra.mxu0 0.0
    %567 = vmatprep.subr.mxu0 0.0
    %568 = vmatpush1.msra.mxu0 0.0
    %569 = vmatprep.subr.mxu0 0.0
    %570 = vmatpush1.msra.mxu0 0.0
    %571 = vmatprep.subr.mxu0 0.0
    %572 = vmatpush1.msra.mxu0 0.0
    %573 = vmatprep.subr.mxu0 0.0
    %574 = vmatpush1.msra.mxu0 0.0
    %575 = vmatprep.subr.mxu0 0.0
    %576 = vmatpush1.msra.mxu0 0.0
    %577 = vmatprep.subr.mxu0 0.0
    %578 = vmatpush1.msra.mxu0 0.0
    %579 = vmatprep.subr.mxu0 0.0
    %580 = vmatpush1.msra.mxu0 0.0
    %581 = vmatprep.subr.mxu0 0.0
    %582 = vmatpush1.msra.mxu0 0.0
    %583 = vmatprep.subr.mxu0 0.0
    %584 = vmatpush1.msra.mxu0 0.0
    %585 = vmatprep.subr.mxu0 0.0
    %586 = vmatpush1.msra.mxu0 %v556
    %587 = vmatprep.subr.mxu0 0.0
    %588 = vmatpush1.msra.mxu0 %v551
    %589 = vmatprep.subr.mxu0 0.0
    %590 = vmatpush1.msra.mxu0 %v546
    %591 = vmatprep.subr.mxu0 0.0
    %592 = vmatpush1.msra.mxu0 %v541
    %593 = vmatprep.subr.mxu0 0.0
    %594 = vmatpush1.msra.mxu0 %v536
    %595 = vmatprep.subr.mxu0 0.0
    %596 = vmatpush2.msra.mxu0 0.0
    %597 = vmatprep.subr.mxu0 0.0
    %598 = vmatpush2.msra.mxu0 0.0
    %599 = vmatprep.subr.mxu0 0.0
    %600 = vmatpush2.msra.mxu0 0.0
    %601 = vmatprep.subr.mxu0 0.0
    %602 = vmatpush2.msra.mxu0 0.0
    %603 = vmatprep.subr.mxu0 0.0
    %604 = vmatpush2.msra.mxu0 0.0
    %605 = vmatprep.subr.mxu0 0.0
    %606 = vmatpush2.msra.mxu0 0.0
    %607 = vmatprep.subr.mxu0 0.0
    %608 = vmatpush2.msra.mxu0 0.0
    %609 = vmatprep.subr.mxu0 0.0
    %610 = vmatpush2.msra.mxu0 0.0
    %611 = vmatprep.subr.mxu0 0.0
    %612 = vmatpush2.msra.mxu0 0.0
    %613 = vmatprep.subr.mxu0 0.0
    %614 = vmatpush2.msra.mxu0 0.0
    %615 = vmatprep.subr.mxu0 0.0
    %616 = vmatpush2.msra.mxu0 0.0
    %617 = vmatprep.subr.mxu0 0.0
    %618 = vmatpush2.msra.mxu0 0.0
    %619 = vmatprep.subr.mxu0 0.0
    %620 = vmatpush2.msra.mxu0 0.0
    %621 = vmatprep.subr.mxu0 0.0
    %622 = vmatpush2.msra.mxu0 0.0
    %623 = vmatprep.subr.mxu0 0.0
    %624 = vmatpush2.msra.mxu0 0.0
    %625 = vmatprep.subr.mxu0 0.0
    %626 = vmatpush2.msra.mxu0 0.0
    %627 = vmatprep.mubr.f32.mxu0 0.0
    %628 = vmatmul.mubr.f32.gmra.mxu0 %v171
    %v629 = vpop.f32.mrf.mxu0
    %v630 = vadd.f32 %v562, %v629
    %v631 = vpop.f32.mrf.mxu0
    %632 = vmatprep.mubr.f32.mxu0 0.0
    %633 = vmatmul.mubr.f32.gmra.mxu0 %v174
    %v634 = vpop.f32.mrf.mxu0
    %v635 = vadd.f32 %v562, %v634
    %v636 = vpop.f32.mrf.mxu0
    %637 = vmatprep.mubr.f32.mxu0 0.0
    %638 = vmatmul.mubr.f32.gmra.mxu0 %v177
    %v639 = vpop.f32.mrf.mxu0
    %v640 = vadd.f32 %v562, %v639
    %v641 = vpop.f32.mrf.mxu0
    %642 = vmatprep.mubr.f32.mxu0 0.0
    %643 = vmatmul.mubr.f32.gmra.mxu0 %v180
    %v644 = vpop.f32.mrf.mxu0
    %v645 = vadd.f32 %v562, %v644
    %v646 = vpop.f32.mrf.mxu0
    %647 = vmatprep.mubr.f32.mxu0 0.0
    %648 = vmatmul.mubr.f32.gmra.mxu0 %v183
    %v649 = vpop.f32.mrf.mxu0
    %v650 = vadd.f32 %v562, %v649
    %v651 = vpop.f32.mrf.mxu0
    %652 = vdwg.mxu0
    %v653 = vtanh.pop %v630
    %v654 = vtanh.pop %v635
    %v655 = vtanh.pop %v640
    %v656 = vtanh.pop %v645
    %v657 = vtanh.pop %v650
    %v658 = vlaneseq
    %v659 = vshrl.u32 %v658, 7
    %v660 = vsub.s32 0, %v659
    %v661 = vrot.slane %v59, %v660
    %662 = vmatprep.subr.mxu0 0.0
    %663 = vmatpush1.msra.mxu0 %v55
    %664 = vmatprep.subr.mxu0 0.0
    %665 = vmatpush1.msra.mxu0 %v54
    %666 = vmatprep.subr.mxu0 0.0
    %667 = vmatpush1.msra.mxu0 %v53
    %668 = vmatprep.subr.mxu0 0.0
    %669 = vmatpush1.msra.mxu0 %v52
    %670 = vmatprep.subr.mxu0 0.0
    %671 = vmatpush1.msra.mxu0 %v51
    %672 = vmatprep.subr.mxu0 0.0
    %673 = vmatpush1.msra.mxu0 %v50
    %674 = vmatprep.subr.mxu0 0.0
    %675 = vmatpush1.msra.mxu0 %v49
    %676 = vmatprep.subr.mxu0 0.0
    %677 = vmatpush1.msra.mxu0 %v48
    %678 = vmatprep.subr.mxu0 0.0
    %679 = vmatpush1.msra.mxu0 %v47
    %680 = vmatprep.subr.mxu0 0.0
    %681 = vmatpush1.msra.mxu0 %v46
    %682 = vmatprep.subr.mxu0 0.0
    %683 = vmatpush1.msra.mxu0 %v45
    %684 = vmatprep.subr.mxu0 0.0
    %685 = vmatpush1.msra.mxu0 %v44
    %686 = vmatprep.subr.mxu0 0.0
    %687 = vmatpush1.msra.mxu0 %v43
    %688 = vmatprep.subr.mxu0 0.0
    %689 = vmatpush1.msra.mxu0 %v42
    %690 = vmatprep.subr.mxu0 0.0
    %691 = vmatpush1.msra.mxu0 %v41
    %692 = vmatprep.subr.mxu0 0.0
    %693 = vmatpush1.msra.mxu0 %v40
    %694 = vmatprep.subr.mxu0 0.0
    %695 = vmatpush2.msra.mxu0 0.0
    %696 = vmatprep.subr.mxu0 0.0
    %697 = vmatpush2.msra.mxu0 0.0
    %698 = vmatprep.subr.mxu0 0.0
    %699 = vmatpush2.msra.mxu0 0.0
    %700 = vmatprep.subr.mxu0 0.0
    %701 = vmatpush2.msra.mxu0 0.0
    %702 = vmatprep.subr.mxu0 0.0
    %703 = vmatpush2.msra.mxu0 0.0
    %704 = vmatprep.subr.mxu0 0.0
    %705 = vmatpush2.msra.mxu0 0.0
    %706 = vmatprep.subr.mxu0 0.0
    %707 = vmatpush2.msra.mxu0 0.0
    %708 = vmatprep.subr.mxu0 0.0
    %709 = vmatpush2.msra.mxu0 0.0
    %710 = vmatprep.subr.mxu0 0.0
    %711 = vmatpush2.msra.mxu0 0.0
    %712 = vmatprep.subr.mxu0 0.0
    %713 = vmatpush2.msra.mxu0 0.0
    %714 = vmatprep.subr.mxu0 0.0
    %715 = vmatpush2.msra.mxu0 0.0
    %716 = vmatprep.subr.mxu0 0.0
    %717 = vmatpush2.msra.mxu0 0.0
    %718 = vmatprep.subr.mxu0 0.0
    %719 = vmatpush2.msra.mxu0 0.0
    %720 = vmatprep.subr.mxu0 0.0
    %721 = vmatpush2.msra.mxu0 0.0
    %722 = vmatprep.subr.mxu0 0.0
    %723 = vmatpush2.msra.mxu0 0.0
    %724 = vmatprep.subr.mxu0 0.0
    %725 = vmatpush2.msra.mxu0 0.0
    %726 = vmatprep.mubr.f32.mxu0 0.0
    %727 = vmatmul.mubr.f32.gmra.mxu0 %v653
    %v728 = vpop.f32.mrf.mxu0
    %v729 = vadd.f32 %v661, %v728
    %v730 = vpop.f32.mrf.mxu0
    %731 = vmatprep.mubr.f32.mxu0 0.0
    %732 = vmatmul.mubr.f32.gmra.mxu0 %v654
    %v733 = vpop.f32.mrf.mxu0
    %v734 = vadd.f32 %v661, %v733
    %v735 = vpop.f32.mrf.mxu0
    %736 = vmatprep.mubr.f32.mxu0 0.0
    %737 = vmatmul.mubr.f32.gmra.mxu0 %v655
    %v738 = vpop.f32.mrf.mxu0
    %v739 = vadd.f32 %v661, %v738
    %v740 = vpop.f32.mrf.mxu0
    %741 = vmatprep.mubr.f32.mxu0 0.0
    %742 = vmatmul.mubr.f32.gmra.mxu0 %v656
    %v743 = vpop.f32.mrf.mxu0
    %v744 = vadd.f32 %v661, %v743
    %v745 = vpop.f32.mrf.mxu0
    %746 = vmatprep.mubr.f32.mxu0 0.0
    %747 = vmatmul.mubr.f32.gmra.mxu0 %v657
    %v748 = vpop.f32.mrf.mxu0
    %v749 = vadd.f32 %v661, %v748
    %v750 = vpop.f32.mrf.mxu0
    %751 = vdwg.mxu0
    %v752 = vlaneseq
    %v753 = vand.u32 %v752, 127
    %vm754 = vcmp.lt.s32.totalorder %v753, 8
    %v755 = vsel %vm754, %v653, %v729
    %v756 = vsel %vm754, %v654, %v734
    %v757 = vsel %vm754, %v655, %v739
    %v758 = vsel %vm754, %v656, %v744
    %v759 = vsel %vm754, %v657, %v749
    %760 = vst [vmem:[%s2] sm:$0xff] %v755
    %761 = vst [vmem:[%s2 + $0x8] sm:$0xff] %v756
    %762 = vst [vmem:[%s2 + $0x10] sm:$0xff] %v757
    %763 = vst [vmem:[%s2 + $0x18] sm:$0xff] %v758
    %764 = vst [vmem:[%s2 + $0x20] sm:$0xff] %v759
    // Predicated region
    $region14: #{forward.1} parent=1 // pred_check
      _
    $region15: #{forward.1} parent=1 // pred_check_branch
      %766 = sbr.rel (0) target = $region17
    $region16: #{forward.1} parent=1 // pred_region
      _
    $region17: #{forward.1} parent=1 // pred_fallthru
      _
    // Predicated region
    $region18: #{forward.1} parent=1 // pred_check
      _
    $region19: #{forward.1} parent=1 // pred_check_branch
      %768 = sbr.rel (0) target = $region21
    $region20: #{forward.1} parent=1 // pred_region
      _
    $region21: #{forward.1} parent=1 // pred_fallthru
      _
    %769 = vsyncpa [#allocation3], 1

</llo_original>
